<compile_context>
chip_gen: v5e
topology: v5e:2x2
jax: 0.10.0
libtpu: 0.0.40
codegen_flags: <defaults>
</compile_context>

<pallas_src>
import math

import jax
import jax.numpy as jnp
from jax import lax
from jax.experimental import pallas as pl
from jax.experimental.pallas import tpu as pltpu


def _round_up(x, m):
    return ((x + m - 1) // m) * m


# ----------------------------------------------------------------------------
# Kernel 1: fused 2-layer MLP projection head (Global/LocalEmbedding) + L2 norm
#   y = L2norm( relu(x @ W1 + b1) @ W2 + b2 , dim=-1 )   (F.normalize eps=1e-12)
# Row-tiled over M; W1/W2 (bf16) and biases use constant index_maps and are
# single-buffered (pl.Buffered(1)) so they stay resident across the grid
# without double-buffer VMEM cost (matters on v7x's 64 MiB/TC).
# ----------------------------------------------------------------------------
def _mlp_l2norm_kernel(x_ref, w1_ref, b1_ref, w2_ref, b2_ref, o_ref):
    x = x_ref[...]                                            # bf16 (cast in wrapper)
    h = jnp.dot(x, w1_ref[...], preferred_element_type=jnp.float32) + b1_ref[...]
    h = jnp.maximum(h, 0.0)
    y = jnp.dot(h.astype(jnp.bfloat16), w2_ref[...],
                preferred_element_type=jnp.float32) + b2_ref[...]
    sq = jnp.sum(y * y, axis=-1, keepdims=True)
    # F.normalize(eps=1e-12): y / max(||y||, 1e-12) == y * rsqrt(max(||y||^2, 1e-24))
    o_ref[...] = (y * lax.rsqrt(jnp.maximum(sq, 1e-24))).astype(o_ref.dtype)


# Whether pipeline_mode=pl.Buffered(1) is supported on this jax build; flipped
# to False on first failure so subsequent calls skip the retry.
_SINGLE_BUFFER_WEIGHTS_OK = [True]


def mlp_l2norm(x, w1, b1, w2, b2, tile_m=512):
    M, Din = x.shape
    H = w1.shape[1]
    Dout = w2.shape[1]
    # 16-row granularity keeps bf16 sublane packing happy for both x and out.
    tm = min(tile_m, _round_up(M, 16))
    Mp = _round_up(M, tm)
    xb = x.astype(jnp.bfloat16)          # halve HBM->VMEM DMA of the row tiles
    if Mp != M:
        xb = jnp.pad(xb, ((0, Mp - M), (0, 0)))
    w1b = w1.astype(jnp.bfloat16)        # halve resident weight footprint
    w2b = w2.astype(jnp.bfloat16)

    def run(single_buffer_weights):
        if single_buffer_weights:
            # Invariant operands (constant index_map): single-buffer them so the
            # pipeline does not spend 2x VMEM on weights that never change.
            def res(shape):
                return pl.BlockSpec(shape, lambda i: (0,) * len(shape),
                                    pipeline_mode=pl.Buffered(1))
        else:
            def res(shape):
                return pl.BlockSpec(shape, lambda i: (0,) * len(shape))
        return pl.pallas_call(
            _mlp_l2norm_kernel,
            out_shape=jax.ShapeDtypeStruct((Mp, Dout), jnp.bfloat16),
            grid=(Mp // tm,),
            in_specs=[
                pl.BlockSpec((tm, Din), lambda i: (i, 0)),
                res((Din, H)),
                res((1, H)),
                res((H, Dout)),
                res((1, Dout)),
            ],
            out_specs=pl.BlockSpec((tm, Dout), lambda i: (i, 0)),
            compiler_params=pltpu.CompilerParams(
                dimension_semantics=("parallel",),
                vmem_limit_bytes=48 * 1024 * 1024,
            ),
        )(xb, w1b, b1, w2b, b2)

    if _SINGLE_BUFFER_WEIGHTS_OK[0]:
        try:
            out = run(True)
        except Exception:   # pl.Buffered(1) unsupported on this jax build
            _SINGLE_BUFFER_WEIGHTS_OK[0] = False
            out = run(False)
    else:
        out = run(False)
    return out[:M] if Mp != M else out


# ----------------------------------------------------------------------------
# Kernel 2: instance (global) contrastive loss.
#   sim = v_fc @ t_fc.T / temp ; CE(rows, eye) both directions, averaged.
# Both directions computed as MXU matmuls so every LSE reduction is on the
# lane axis; the diagonal comes straight from the (B,D) operands (no iotas).
# NOTE: for production-scale B (>~2k) tile over query rows with an online LSE
# so the (B,B) sim never has to fit one v7x TC's 64 MiB VMEM.
# ----------------------------------------------------------------------------
def _make_instance_kernel(temp, B):
    inv_temp = 1.0 / float(temp)

    def kernel(v_ref, t_ref, o_ref):
        v = v_ref[...]                                    # (B, D) bf16
        t = t_ref[...]                                    # (B, D) bf16
        sim_vt = lax.dot_general(v, t, (((1,), (1,)), ((), ())),
                                 preferred_element_type=jnp.float32) * inv_temp
        sim_tv = lax.dot_general(t, v, (((1,), (1,)), ((), ())),
                                 preferred_element_type=jnp.float32) * inv_temp
        # diagonal of sim directly from the operands (no (B,B) iota/where mask)
        diag = jnp.sum(v.astype(jnp.float32) * t.astype(jnp.float32),
                       axis=-1, keepdims=True) * inv_temp              # (B,1)
        sum_diag = jnp.sum(diag, axis=0, keepdims=True)                 # (1,1)
        # v->t : CE over rows of sim_vt (lane-axis LSE)
        m1 = jnp.max(sim_vt, axis=1, keepdims=True)
        lse1 = m1 + jnp.log(jnp.sum(jnp.exp(sim_vt - m1), axis=1, keepdims=True))
        s1 = jnp.sum(lse1, axis=0, keepdims=True)                       # (1,1)
        # t->v : CE over rows of sim_tv (lane-axis LSE)
        m2 = jnp.max(sim_tv, axis=1, keepdims=True)
        lse2 = m2 + jnp.log(jnp.sum(jnp.exp(sim_tv - m2), axis=1, keepdims=True))
        s2 = jnp.sum(lse2, axis=0, keepdims=True)                       # (1,1)
        o_ref[...] = (s1 + s2 - 2.0 * sum_diag) * (0.5 / B)

    return kernel


def instance_loss(v_fc, t_fc, temp):
    B, D = v_fc.shape
    out = pl.pallas_call(
        _make_instance_kernel(temp, B),
        out_shape=jax.ShapeDtypeStruct((1, 1), jnp.float32),
        grid=(1,),
        in_specs=[
            pl.BlockSpec((B, D), lambda i: (0, 0)),
            pl.BlockSpec((B, D), lambda i: (0, 0)),
        ],
        out_specs=pl.BlockSpec((1, 1), lambda i: (0, 0)),
        compiler_params=pltpu.CompilerParams(
            dimension_semantics=("arbitrary",)),
    )(v_fc, t_fc)
    return out[0, 0]


# ----------------------------------------------------------------------------
# Kernel 3: region (word-level) contrastive loss.
#   att   = softmax(t_att @ v_att.T / sqrt(D))        (per sample)
#   t_out = L2norm(att @ v_att)
#   ws    = t_att @ t_out.T / region_temp             (N x N)
#   CE over rows + CE over cols, diag targets; averaged over 2*B*N.
# Batched Bb samples per grid step (parallel axis, megacore on v7x).
#  - softmax denominator elided: the positive per-row scale cancels under the
#    following per-row L2 normalization (bit-equivalent result),
#  - 1/region_temp folded once into the (Bb,N,D) t_out operand instead of
#    scaling both (Bb,N,N) logit tensors,
#  - diagonal computed from the (Bb,N,D) operands (no (Bb,N,N) iota masks).
# Per-sample partials emitted to a lane-dense output, reduced in the wrapper.
# ----------------------------------------------------------------------------
def _make_region_kernel(region_temp, Bb, N, D):
    inv_sqrt_d = 1.0 / math.sqrt(D)
    inv_temp = 1.0 / float(region_temp)

    def kernel(t_ref, v_ref, o_ref):
        t = t_ref[...]                                   # (Bb, N, D) bf16
        v = v_ref[...]                                   # (Bb, M, D) bf16

        # att[b,n,m] = t[b,n] . v[b,m]  (transpose folded into contraction)
        att = lax.dot_general(t, v, (((2,), (2,)), ((0,), (0,))),
                              preferred_element_type=jnp.float32) * inv_sqrt_d
        att_max = jnp.max(att, axis=-1, keepdims=True)
        p = jnp.exp(att - att_max)        # unnormalized: denom cancels in L2norm

        # t_out = L2norm(exp(att - max) @ v)
        t_out = lax.dot_general(p.astype(jnp.bfloat16), v,
                                (((2,), (1,)), ((0,), (0,))),
                                preferred_element_type=jnp.float32)     # (Bb,N,D)
        t_out = t_out * lax.rsqrt(
            jnp.maximum(jnp.sum(t_out * t_out, axis=-1, keepdims=True), 1e-24))
        t_out_s = t_out * inv_temp          # fold 1/temp into the (Bb,N,D) operand
        t_out_bf = t_out_s.astype(jnp.bfloat16)

        # ws[b,n1,n2] = t[b,n1] . t_out_s[b,n2] ; ws_t is its per-sample transpose
        ws = lax.dot_general(t, t_out_bf, (((2,), (2,)), ((0,), (0,))),
                             preferred_element_type=jnp.float32)
        ws_t = lax.dot_general(t_out_bf, t, (((2,), (2,)), ((0,), (0,))),
                               preferred_element_type=jnp.float32)

        # diagonal of ws directly from the operands (no iota masks)
        diag = jnp.sum(t.astype(jnp.float32) * t_out_s,
                       axis=-1, keepdims=True)                           # (Bb,N,1)

        m1 = jnp.max(ws, axis=2, keepdims=True)
        lse1 = m1 + jnp.log(jnp.sum(jnp.exp(ws - m1), axis=2, keepdims=True))
        m2 = jnp.max(ws_t, axis=2, keepdims=True)
        lse2 = m2 + jnp.log(jnp.sum(jnp.exp(ws_t - m2), axis=2, keepdims=True))

        tot = lse1 + lse2 - 2.0 * diag                                   # (Bb,N,1)
        # per-sample reduction over N as a batched mat-vec so every reduction in
        # this kernel stays on the minor (lane) axis.
        ones_row = jnp.ones((Bb, 1, N), jnp.float32)
        per_sample = lax.dot_general(ones_row, tot, (((2,), (1,)), ((0,), (0,))),
                                     preferred_element_type=jnp.float32)  # (Bb,1,1)
        o_ref[...] = jnp.broadcast_to(per_sample, (Bb, 1, 128))

    return kernel


def region_loss(t_att, v_att, region_temp, block_b=16):
    # block_b=16 amortizes per-grid-step overhead over many tiny per-sample
    # matmuls; for v7x pick block_b so num_steps is >= 2 and even (megacore).
    B, N, D = t_att.shape
    M = v_att.shape[1]
    if B <= block_b:
        bb, Bp = B, B
    else:
        bb = block_b
        Bp = _round_up(B, bb)
        if Bp != B:
            t_att = jnp.pad(t_att, ((0, Bp - B), (0, 0), (0, 0)))
            v_att = jnp.pad(v_att, ((0, Bp - B), (0, 0), (0, 0)))
    num_steps = Bp // bb
    partial = pl.pallas_call(
        _make_region_kernel(region_temp, bb, N, D),
        out_shape=jax.ShapeDtypeStruct((Bp, 1, 128), jnp.float32),
        grid=(num_steps,),
        in_specs=[
            pl.BlockSpec((bb, N, D), lambda s: (s, 0, 0)),
            pl.BlockSpec((bb, M, D), lambda s: (s, 0, 0)),
        ],
        out_specs=pl.BlockSpec((bb, 1, 128), lambda s: (s, 0, 0)),
        compiler_params=pltpu.CompilerParams(
            dimension_semantics=("parallel",),
            vmem_limit_bytes=32 * 1024 * 1024,
        ),
    )(t_att, v_att)
    total = jnp.sum(partial[:B, 0, 0])          # drop padded samples, reduce in XLA
    return total * (0.5 / (B * N))


# ----------------------------------------------------------------------------
# Stand-in encoders (external submodules in the reference code).
# ----------------------------------------------------------------------------
PATCH = 8


def visual_extractor_standin(images, w_patch, b_patch):
    # TODO(synk): stand-in for the ResNet101 visual extractor (att_feats = last
    # conv map flattened, fc_feats = global average pool); here: linear patchify.
    B, C, H, W = images.shape
    x = jnp.transpose(images, (0, 2, 3, 1))  # NCHW -> NHWC
    x = x.reshape(B, H // PATCH, PATCH, W // PATCH, PATCH, C)
    x = jnp.transpose(x, (0, 1, 3, 2, 4, 5)).reshape(
        B, (H // PATCH) * (W // PATCH), PATCH * PATCH * C
    )
    att_feats = jnp.dot(x, w_patch) + b_patch  # (B, Np, visual_dim)
    fc_feats = jnp.mean(att_feats, axis=1)     # (B, visual_dim)
    return att_feats, fc_feats


def text_encoder_standin(ids, mask, emb):
    # TODO(synk): stand-in for the BERT-style TextEncoderModel (returns the
    # final hidden states); here: masked embedding lookup.
    feats = emb[ids] * mask[..., None].astype(emb.dtype)  # (B, T, text_dim)
    return feats


# ----------------------------------------------------------------------------
# Full forward pass of Pretrain (mimic_cxr branch: images -> single view).
# ----------------------------------------------------------------------------
def pretrain_forward(params, images, radgraph_ids, radgraph_masks, args):
    B = images.shape[0]

    # visual_forward_mimic_cxr
    att_feats, fc_feats = visual_extractor_standin(
        images, params["w_patch"], params["b_patch"]
    )

    # visual local / global projection heads + F.normalize(dim=-1)  (bf16 out)
    Np, Dv = att_feats.shape[1], att_feats.shape[2]
    v_att_feats = mlp_l2norm(
        att_feats.reshape(B * Np, Dv), *params["visual_local"]
    ).reshape(B, Np, -1)
    v_fc_feats = mlp_l2norm(fc_feats, *params["visual_global"])

    # text encoder + local / global heads
    text_feats = text_encoder_standin(radgraph_ids, radgraph_masks, params["emb"])
    Nt, Dt = text_feats.shape[1] - 1, text_feats.shape[2]
    t_att_feats = mlp_l2norm(
        text_feats[:, 1:, :].reshape(B * Nt, Dt), *params["text_local"]
    ).reshape(B, Nt, -1)
    t_fc_feats = mlp_l2norm(text_feats[:, 0, :], *params["text_global"])

    # global instance ITC loss (both directions), Pallas kernel
    itc_instance_loss = instance_loss(v_fc_feats, t_fc_feats, args["instance_temp"])

    # region (word-level) ITC loss, Pallas kernel (is_self_att = False branch)
    itc_region_loss = region_loss(t_att_feats, v_att_feats, args["region_temp"])

    return {
        "itc_region": itc_region_loss,
        "itc_instance": itc_instance_loss,
        "all_loss": itc_instance_loss + itc_region_loss,
    }


# ----------------------------------------------------------------------------
# Deterministic parameter construction.
# ----------------------------------------------------------------------------
def make_head_params(key, din, dhid, dout):
    k1, k2 = jax.random.split(key)
    w1 = jax.random.normal(k1, (din, dhid), jnp.float32) * 0.02
    b1 = jnp.zeros((1, dhid), jnp.float32)
    w2 = jax.random.normal(k2, (dhid, dout), jnp.float32) * 0.02
    b2 = jnp.zeros((1, dout), jnp.float32)
    return (w1, b1, w2, b2)


if __name__ == "__main__":
    # small shapes consistent with the forward pass
    B = 2
    H = W = 32                  # images
    VISUAL_DIM = 128            # stands in for 2048 (resnet101)
    TEXT_DIM = 128              # stands in for BERT hidden size
    OUTPUT_DIM = 128            # args['output_dim']
    VOCAB = 100
    T = 9                       # radgraph seq length (1 CLS + 8 tokens)
    args = {"instance_temp": 0.07, "region_temp": 0.07, "output_dim": OUTPUT_DIM}

    key = jax.random.PRNGKey(0)
    keys = jax.random.split(key, 8)

    params = {
        "w_patch": jax.random.normal(
            keys[0], (PATCH * PATCH * 3, VISUAL_DIM), jnp.float32
        ) * 0.02,
        "b_patch": jnp.zeros((VISUAL_DIM,), jnp.float32),
        "emb": jax.random.normal(keys[1], (VOCAB, TEXT_DIM), jnp.float32) * 0.02,
        "visual_local": make_head_params(keys[2], VISUAL_DIM, VISUAL_DIM, OUTPUT_DIM),
        "visual_global": make_head_params(keys[3], VISUAL_DIM, VISUAL_DIM, OUTPUT_DIM),
        "text_local": make_head_params(keys[4], TEXT_DIM, TEXT_DIM, OUTPUT_DIM),
        "text_global": make_head_params(keys[5], TEXT_DIM, TEXT_DIM, OUTPUT_DIM),
    }

    images = jax.random.normal(keys[6], (B, 3, H, W), jnp.float32)
    radgraph_ids = jax.random.randint(keys[7], (B, T), 0, VOCAB, dtype=jnp.int32)
    radgraph_masks = jnp.ones((B, T), jnp.float32)

    out = pretrain_forward(params, images, radgraph_ids, radgraph_masks, args)
    out = jax.tree_util.tree_map(jax.block_until_ready, out)

    for k in ("itc_region", "itc_instance", "all_loss"):
        assert jnp.isfinite(out[k]), f"non-finite loss {k}"
    print("KERNEL_OK")
</pallas_src>

<mosaic_0001>
module attributes {stable_mosaic.version = 11 : i64} {
  func.func @_mlp_l2norm_kernel(%arg0: i32, %arg1: memref<32x128xbf16, #tpu.memory_space<vmem>>, %arg2: memref<128x128xbf16, #tpu.memory_space<vmem>>, %arg3: memref<1x128xf32, #tpu.memory_space<vmem>>, %arg4: memref<128x128xbf16, #tpu.memory_space<vmem>>, %arg5: memref<1x128xf32, #tpu.memory_space<vmem>>, %arg6: memref<32x128xbf16, #tpu.memory_space<vmem>>) attributes {dimension_semantics = [#tpu.dimension_semantics<parallel>], iteration_bounds = array<i64: 1>, scalar_prefetch = 0 : i64, scratch_operands = 0 : i64, tpu.core_type = #tpu.core_type<tc>, window_params = [{transform_indices = @transform_0, window_bounds = array<i64: 32, 128>}, {pipeline_mode = #tpu.pipeline_mode<synchronous>, transform_indices = @transform_1, window_bounds = array<i64: 128, 128>}, {pipeline_mode = #tpu.pipeline_mode<synchronous>, transform_indices = @transform_2, window_bounds = array<i64: 1, 128>}, {pipeline_mode = #tpu.pipeline_mode<synchronous>, transform_indices = @transform_3, window_bounds = array<i64: 128, 128>}, {pipeline_mode = #tpu.pipeline_mode<synchronous>, transform_indices = @transform_4, window_bounds = array<i64: 1, 128>}, {transform_indices = @transform_5, window_bounds = array<i64: 32, 128>}]} {
    %c0 = arith.constant 0 : index
    %c0_0 = arith.constant 0 : index
    %0 = vector.load %arg1[%c0, %c0_0] : memref<32x128xbf16, #tpu.memory_space<vmem>>, vector<32x128xbf16>
    %c0_1 = arith.constant 0 : index
    %c0_2 = arith.constant 0 : index
    %1 = vector.load %arg2[%c0_1, %c0_2] : memref<128x128xbf16, #tpu.memory_space<vmem>>, vector<128x128xbf16>
    %cst = arith.constant dense<0.000000e+00> : vector<32x128xf32>
    %2 = tpu.matmul %0, %1, %cst {dimension_numbers = #tpu.dot_dimension_numbers<[1], [0], [0], [1], [0, 0, 1, 1], [], []>} : vector<32x128xbf16>, vector<128x128xbf16>, vector<32x128xf32> -> vector<32x128xf32>
    %c0_3 = arith.constant 0 : index
    %c0_4 = arith.constant 0 : index
    %3 = vector.load %arg3[%c0_3, %c0_4] : memref<1x128xf32, #tpu.memory_space<vmem>>, vector<1x128xf32>
    %4 = vector.broadcast %3 : vector<1x128xf32> to vector<32x128xf32>
    %5 = arith.addf %2, %4 : vector<32x128xf32>
    %cst_5 = arith.constant 0.000000e+00 : f32
    %6 = vector.broadcast %cst_5 : f32 to vector<32x128xf32>
    %7 = arith.maximumf %5, %6 : vector<32x128xf32>
    %8 = arith.truncf %7 : vector<32x128xf32> to vector<32x128xbf16>
    %c0_6 = arith.constant 0 : index
    %c0_7 = arith.constant 0 : index
    %9 = vector.load %arg4[%c0_6, %c0_7] : memref<128x128xbf16, #tpu.memory_space<vmem>>, vector<128x128xbf16>
    %cst_8 = arith.constant dense<0.000000e+00> : vector<32x128xf32>
    %10 = tpu.matmul %8, %9, %cst_8 {dimension_numbers = #tpu.dot_dimension_numbers<[1], [0], [0], [1], [0, 0, 1, 1], [], []>} : vector<32x128xbf16>, vector<128x128xbf16>, vector<32x128xf32> -> vector<32x128xf32>
    %c0_9 = arith.constant 0 : index
    %c0_10 = arith.constant 0 : index
    %11 = vector.load %arg5[%c0_9, %c0_10] : memref<1x128xf32, #tpu.memory_space<vmem>>, vector<1x128xf32>
    %12 = vector.broadcast %11 : vector<1x128xf32> to vector<32x128xf32>
    %13 = arith.addf %10, %12 : vector<32x128xf32>
    %14 = arith.mulf %13, %13 : vector<32x128xf32>
    %cst_11 = arith.constant dense<0.000000e+00> : vector<32xf32>
    %15 = vector.multi_reduction <add>, %14, %cst_11 [1] : vector<32x128xf32> to vector<32xf32>
    %16 = vector.shape_cast %15 : vector<32xf32> to vector<32x1xf32>
    %cst_12 = arith.constant 1.000000e-24 : f32
    %17 = vector.broadcast %cst_12 : f32 to vector<32x1xf32>
    %18 = arith.maximumf %16, %17 : vector<32x1xf32>
    %19 = math.rsqrt %18 : vector<32x1xf32>
    %20 = vector.broadcast %19 : vector<32x1xf32> to vector<32x128xf32>
    %21 = arith.mulf %13, %20 : vector<32x128xf32>
    %22 = arith.truncf %21 : vector<32x128xf32> to vector<32x128xbf16>
    %c0_13 = arith.constant 0 : index
    %c0_14 = arith.constant 0 : index
    %23 = vector.load %arg6[%c0_13, %c0_14] : memref<32x128xbf16, #tpu.memory_space<vmem>>, vector<32x128xbf16>
    tpu.vector_store %arg6[%c0_13, %c0_14], %22 {strides = array<i32>} : memref<32x128xbf16, #tpu.memory_space<vmem>>, vector<32x128xbf16>,
    return
  }
  func.func @transform_0(%arg0: i32) -> (i32, i32) {
    %c0_i32 = arith.constant 0 : i32
    %c0_i32_0 = arith.constant 0 : i32
    return %arg0, %c0_i32 : i32, i32
  }
  func.func @transform_1(%arg0: i32) -> (i32, i32) {
    %c0_i32 = arith.constant 0 : i32
    %c0_i32_0 = arith.constant 0 : i32
    %c0_i32_1 = arith.constant 0 : i32
    return %c0_i32, %c0_i32_0 : i32, i32
  }
  func.func @transform_2(%arg0: i32) -> (i32, i32) {
    %c0_i32 = arith.constant 0 : i32
    %c0_i32_0 = arith.constant 0 : i32
    %c0_i32_1 = arith.constant 0 : i32
    return %c0_i32, %c0_i32_0 : i32, i32
  }
  func.func @transform_3(%arg0: i32) -> (i32, i32) {
    %c0_i32 = arith.constant 0 : i32
    %c0_i32_0 = arith.constant 0 : i32
    %c0_i32_1 = arith.constant 0 : i32
    return %c0_i32, %c0_i32_0 : i32, i32
  }
  func.func @transform_4(%arg0: i32) -> (i32, i32) {
    %c0_i32 = arith.constant 0 : i32
    %c0_i32_0 = arith.constant 0 : i32
    %c0_i32_1 = arith.constant 0 : i32
    return %c0_i32, %c0_i32_0 : i32, i32
  }
  func.func @transform_5(%arg0: i32) -> (i32, i32) {
    %c0_i32 = arith.constant 0 : i32
    %c0_i32_0 = arith.constant 0 : i32
    return %arg0, %c0_i32 : i32, i32
  }
}

module attributes {stable_mosaic.version = 11 : i64} {
  func.func @_mlp_l2norm_kernel(%arg0: i32, %arg1: memref<32x128xbf16, #tpu.memory_space<vmem>>, %arg2: memref<128x128xbf16, #tpu.memory_space<vmem>>, %arg3: memref<1x128xf32, #tpu.memory_space<vmem>>, %arg4: memref<128x128xbf16, #tpu.memory_space<vmem>>, %arg5: memref<1x128xf32, #tpu.memory_space<vmem>>, %arg6: memref<32x128xbf16, #tpu.memory_space<vmem>>) attributes {dimension_semantics = [#tpu.dimension_semantics<parallel>], iteration_bounds = array<i64: 1>, scalar_prefetch = 0 : i64, scratch_operands = 0 : i64, tpu.core_type = #tpu.core_type<tc>, window_params = [{transform_indices = @transform_0, window_bounds = array<i64: 32, 128>}, {pipeline_mode = #tpu.pipeline_mode<synchronous>, transform_indices = @transform_1, window_bounds = array<i64: 128, 128>}, {pipeline_mode = #tpu.pipeline_mode<synchronous>, transform_indices = @transform_2, window_bounds = array<i64: 1, 128>}, {pipeline_mode = #tpu.pipeline_mode<synchronous>, transform_indices = @transform_3, window_bounds = array<i64: 128, 128>}, {pipeline_mode = #tpu.pipeline_mode<synchronous>, transform_indices = @transform_4, window_bounds = array<i64: 1, 128>}, {transform_indices = @transform_5, window_bounds = array<i64: 32, 128>}]} {
    %c0 = arith.constant 0 : index
    %c0_0 = arith.constant 0 : index
    %0 = vector.load %arg1[%c0, %c0_0] : memref<32x128xbf16, #tpu.memory_space<vmem>>, vector<32x128xbf16>
    %c0_1 = arith.constant 0 : index
    %c0_2 = arith.constant 0 : index
    %1 = vector.load %arg2[%c0_1, %c0_2] : memref<128x128xbf16, #tpu.memory_space<vmem>>, vector<128x128xbf16>
    %cst = arith.constant dense<0.000000e+00> : vector<32x128xf32>
    %2 = tpu.matmul %0, %1, %cst {dimension_numbers = #tpu.dot_dimension_numbers<[1], [0], [0], [1], [0, 0, 1, 1], [], []>} : vector<32x128xbf16>, vector<128x128xbf16>, vector<32x128xf32> -> vector<32x128xf32>
    %c0_3 = arith.constant 0 : index
    %c0_4 = arith.constant 0 : index
    %3 = vector.load %arg3[%c0_3, %c0_4] : memref<1x128xf32, #tpu.memory_space<vmem>>, vector<1x128xf32>
    %4 = vector.broadcast %3 : vector<1x128xf32> to vector<32x128xf32>
    %5 = arith.addf %2, %4 : vector<32x128xf32>
    %cst_5 = arith.constant 0.000000e+00 : f32
    %6 = vector.broadcast %cst_5 : f32 to vector<32x128xf32>
    %7 = arith.maximumf %5, %6 : vector<32x128xf32>
    %8 = arith.truncf %7 : vector<32x128xf32> to vector<32x128xbf16>
    %c0_6 = arith.constant 0 : index
    %c0_7 = arith.constant 0 : index
    %9 = vector.load %arg4[%c0_6, %c0_7] : memref<128x128xbf16, #tpu.memory_space<vmem>>, vector<128x128xbf16>
    %cst_8 = arith.constant dense<0.000000e+00> : vector<32x128xf32>
    %10 = tpu.matmul %8, %9, %cst_8 {dimension_numbers = #tpu.dot_dimension_numbers<[1], [0], [0], [1], [0, 0, 1, 1], [], []>} : vector<32x128xbf16>, vector<128x128xbf16>, vector<32x128xf32> -> vector<32x128xf32>
    %c0_9 = arith.constant 0 : index
    %c0_10 = arith.constant 0 : index
    %11 = vector.load %arg5[%c0_9, %c0_10] : memref<1x128xf32, #tpu.memory_space<vmem>>, vector<1x128xf32>
    %12 = vector.broadcast %11 : vector<1x128xf32> to vector<32x128xf32>
    %13 = arith.addf %10, %12 : vector<32x128xf32>
    %14 = arith.mulf %13, %13 : vector<32x128xf32>
    %cst_11 = arith.constant dense<0.000000e+00> : vector<32xf32>
    %15 = vector.multi_reduction <add>, %14, %cst_11 [1] : vector<32x128xf32> to vector<32xf32>
    %16 = vector.shape_cast %15 : vector<32xf32> to vector<32x1xf32>
    %cst_12 = arith.constant 1.000000e-24 : f32
    %17 = vector.broadcast %cst_12 : f32 to vector<32x1xf32>
    %18 = arith.maximumf %16, %17 : vector<32x1xf32>
    %19 = math.rsqrt %18 : vector<32x1xf32>
    %20 = vector.broadcast %19 : vector<32x1xf32> to vector<32x128xf32>
    %21 = arith.mulf %13, %20 : vector<32x128xf32>
    %22 = arith.truncf %21 : vector<32x128xf32> to vector<32x128xbf16>
    %c0_13 = arith.constant 0 : index
    %c0_14 = arith.constant 0 : index
    %23 = vector.load %arg6[%c0_13, %c0_14] : memref<32x128xbf16, #tpu.memory_space<vmem>>, vector<32x128xbf16>
    tpu.vector_store %arg6[%c0_13, %c0_14], %22 {strides = array<i32>} : memref<32x128xbf16, #tpu.memory_space<vmem>>, vector<32x128xbf16>,
    return
  }
  func.func @transform_0(%arg0: i32) -> (i32, i32) {
    %c0_i32 = arith.constant 0 : i32
    %c0_i32_0 = arith.constant 0 : i32
    return %arg0, %c0_i32 : i32, i32
  }
  func.func @transform_1(%arg0: i32) -> (i32, i32) {
    %c0_i32 = arith.constant 0 : i32
    %c0_i32_0 = arith.constant 0 : i32
    %c0_i32_1 = arith.constant 0 : i32
    return %c0_i32, %c0_i32_0 : i32, i32
  }
  func.func @transform_2(%arg0: i32) -> (i32, i32) {
    %c0_i32 = arith.constant 0 : i32
    %c0_i32_0 = arith.constant 0 : i32
    %c0_i32_1 = arith.constant 0 : i32
    return %c0_i32, %c0_i32_0 : i32, i32
  }
  func.func @transform_3(%arg0: i32) -> (i32, i32) {
    %c0_i32 = arith.constant 0 : i32
    %c0_i32_0 = arith.constant 0 : i32
    %c0_i32_1 = arith.constant 0 : i32
    return %c0_i32, %c0_i32_0 : i32, i32
  }
  func.func @transform_4(%arg0: i32) -> (i32, i32) {
    %c0_i32 = arith.constant 0 : i32
    %c0_i32_0 = arith.constant 0 : i32
    %c0_i32_1 = arith.constant 0 : i32
    return %c0_i32, %c0_i32_0 : i32, i32
  }
  func.func @transform_5(%arg0: i32) -> (i32, i32) {
    %c0_i32 = arith.constant 0 : i32
    %c0_i32_0 = arith.constant 0 : i32
    return %arg0, %c0_i32 : i32, i32
  }
}

</mosaic_0001>

<llo_original>
// kernel: tpu_custom_call.1
$region0: #{tpu_custom_call.1}
  #allocation0 [shape = 'u32[]', space=smem, size = 0x4, offset = 0x4, fixed_abs, tag = 'smem constant byte address 0x4 - core index']
  #allocation1 [shape = 'u32[72,128]{1,0:T(1,128)}', space=vmem, size = 0x9000, scoped, tag = 'internal scratch']
  %s0 = inlined_call_operand.hbm [shape: bf16[32,128], index: 0, kind: input, shape index: {}]
  %s1 = inlined_call_operand.hbm [shape: bf16[128,128], index: 1, kind: input, shape index: {}]
  %s2 = inlined_call_operand.vmem [shape: f32[1,128], index: 2, kind: input, shape index: {}]
  %s3 = inlined_call_operand.hbm [shape: bf16[128,128], index: 3, kind: input, shape index: {}]
  %s4 = inlined_call_operand.vmem [shape: f32[1,128], index: 4, kind: input, shape index: {}]
  %s5 = inlined_call_operand.hbm [shape: bf16[32,128], index: 5, kind: output, shape index: {}]
  %s6 = sld [smem:[#allocation0]]
  $region42: #{tpu_custom_call.1} parent=0
    _
  %s8 = ssub.s32 1, %s6
  %s9 = scalar_select 0, %s8, %s6
  $region1: #{tpu_custom_call.1} parent=0
    #allocation2 [shape = 'u8[8192]{0}', space=vmem, size = 0x2000, scoped, tag = 'input window, operand 0, single buffered']
    #allocation3 [shape = 's32[1]{0}', space=sflag, size = 0x4, scoped, tag = 'scoped memory for tpu_custom_call.1']
    #allocation4 [shape = 's32[1]{0}', space=sflag, size = 0x4, scoped, tag = 'scoped memory for tpu_custom_call.1']
    #allocation5 [shape = 'u8[32768]{0}', space=vmem, size = 0x8000, scoped, tag = 'input window, operand 1, single buffered']
    #allocation6 [shape = 's32[1]{0}', space=sflag, size = 0x4, scoped, tag = 'scoped memory for tpu_custom_call.1']
    #allocation7 [shape = 'u8[32768]{0}', space=vmem, size = 0x8000, scoped, tag = 'input window, operand 3, single buffered']
    #allocation8 [shape = 'u8[8192]{0}', space=vmem, size = 0x2000, scoped, tag = 'output window, operand 0, single buffered']
    %10 = vsyncpa [#allocation3], 0
    %11 = vsyncpa [#allocation6], 0
    %12 = vsyncpa [#allocation4], 0
    // Predicated region
    $region2: #{tpu_custom_call.1} parent=1 // pred_check
      _
    $region3: #{tpu_custom_call.1} parent=1 // pred_check_branch
      %14 = sbr.rel (0) target = $region5
    $region4: #{tpu_custom_call.1} parent=1 // pred_region
      %16 = vsyncadd [#allocation3], 0
      %s17 = sshll.u32 %s0, 4
      %s18 = int_to_ptr.hbm [resolvable:$true] %s17
      %s19 = sshll.u32 [#allocation2], 4
      %s20 = int_to_ptr.vmem [resolvable:$true] %s19
      %25 = dma.hbm_to_vmem [thread:$0]  %s18, 256, %s20, [#allocation3], 64, 64, 4
    $region5: #{tpu_custom_call.1} parent=1 // pred_fallthru
      _
    // Predicated region
    $region6: #{tpu_custom_call.1} parent=1 // pred_check
      _
    $region7: #{tpu_custom_call.1} parent=1 // pred_check_branch
      %27 = sbr.rel (0) target = $region9
    $region8: #{tpu_custom_call.1} parent=1 // pred_region
      %29 = vsyncadd [#allocation6], 0
      %s30 = sshll.u32 %s1, 4
      %s31 = int_to_ptr.hbm [resolvable:$true] %s30
      %s32 = sshll.u32 [#allocation5], 4
      %s33 = int_to_ptr.vmem [resolvable:$true] %s32
      %38 = dma.hbm_to_vmem [thread:$0]  %s31, 1024, %s33, [#allocation6], 64, 64, 4
    $region9: #{tpu_custom_call.1} parent=1 // pred_fallthru
      _
    // Predicated region
    $region10: #{tpu_custom_call.1} parent=1 // pred_check
      _
    $region11: #{tpu_custom_call.1} parent=1 // pred_check_branch
      %40 = sbr.rel (0) target = $region13
    $region12: #{tpu_custom_call.1} parent=1 // pred_region
      _
    $region13: #{tpu_custom_call.1} parent=1 // pred_fallthru
      _
    // Predicated region
    $region14: #{tpu_custom_call.1} parent=1 // pred_check
      _
    $region15: #{tpu_custom_call.1} parent=1 // pred_check_branch
      %42 = sbr.rel (0) target = $region17
    $region16: #{tpu_custom_call.1} parent=1 // pred_region
      %44 = vsyncadd [#allocation6], 0
      %s45 = sshll.u32 %s3, 4
      %s46 = int_to_ptr.hbm [resolvable:$true] %s45
      %s47 = sshll.u32 [#allocation7], 4
      %s48 = int_to_ptr.vmem [resolvable:$true] %s47
      %53 = dma.hbm_to_vmem [thread:$0]  %s46, 1024, %s48, [#allocation6], 64, 64, 4
    $region17: #{tpu_custom_call.1} parent=1 // pred_fallthru
      _
    // Predicated region
    $region18: #{tpu_custom_call.1} parent=1 // pred_check
      _
    $region19: #{tpu_custom_call.1} parent=1 // pred_check_branch
      %55 = sbr.rel (0) target = $region21
    $region20: #{tpu_custom_call.1} parent=1 // pred_region
      _
    $region21: #{tpu_custom_call.1} parent=1 // pred_fallthru
      _
    // Predicated region
    $region22: #{tpu_custom_call.1} parent=1 // pred_check
      _
    $region23: #{tpu_custom_call.1} parent=1 // pred_check_branch
      %57 = sbr.rel (0) target = $region25
    $region24: #{tpu_custom_call.1} parent=1 // pred_region
      %59 = dma.done [#allocation3], 256
    $region25: #{tpu_custom_call.1} parent=1 // pred_fallthru
      _
    // Predicated region
    $region26: #{tpu_custom_call.1} parent=1 // pred_check
      _
    $region27: #{tpu_custom_call.1} parent=1 // pred_check_branch
      %61 = sbr.rel (0) target = $region29
    $region28: #{tpu_custom_call.1} parent=1 // pred_region
      %63 = dma.done [#allocation6], 1024
    $region29: #{tpu_custom_call.1} parent=1 // pred_fallthru
      _
    // Predicated region
    $region30: #{tpu_custom_call.1} parent=1 // pred_check
      _
    $region31: #{tpu_custom_call.1} parent=1 // pred_check_branch
      %65 = sbr.rel (0) target = $region33
    $region32: #{tpu_custom_call.1} parent=1 // pred_region
      %67 = dma.done [#allocation6], 1024
    $region33: #{tpu_custom_call.1} parent=1 // pred_fallthru
      _
    %v68 = vld [vmem:[#allocation2] sm:$0xf]
    %v69 = vld [vmem:[#allocation2 + $0x4] sm:$0xf]
    %v70 = vld [vmem:[#allocation2 + $0x8] sm:$0xf]
    %v71 = vld [vmem:[#allocation2 + $0xc] sm:$0xf]
    %v72 = vld [vmem:[#allocation5] sm:$0xf]
    %v73 = vld [vmem:[#allocation5 + $0x4] sm:$0xf]
    %v74 = vld [vmem:[#allocation5 + $0x8] sm:$0xf]
    %v75 = vld [vmem:[#allocation5 + $0xc] sm:$0xf]
    %v76 = vld [vmem:[#allocation5 + $0x10] sm:$0xf]
    %v77 = vld [vmem:[#allocation5 + $0x14] sm:$0xf]
    %v78 = vld [vmem:[#allocation5 + $0x18] sm:$0xf]
    %v79 = vld [vmem:[#allocation5 + $0x1c] sm:$0xf]
    %v80 = vld [vmem:[#allocation5 + $0x20] sm:$0xf]
    %v81 = vld [vmem:[#allocation5 + $0x24] sm:$0xf]
    %v82 = vld [vmem:[#allocation5 + $0x28] sm:$0xf]
    %v83 = vld [vmem:[#allocation5 + $0x2c] sm:$0xf]
    %v84 = vld [vmem:[#allocation5 + $0x30] sm:$0xf]
    %v85 = vld [vmem:[#allocation5 + $0x34] sm:$0xf]
    %v86 = vld [vmem:[#allocation5 + $0x38] sm:$0xf]
    %v87 = vld [vmem:[#allocation5 + $0x3c] sm:$0xf]
    %v88 = vld [vmem:[%s2] sm:$0x1]
    %v90 = vperm.slane %v88, 0
    %v96 = vunpack.c.l.b16 %v68
    %v97 = vunpack.c.l.b16 %v69
    %v98 = vunpack.c.l.b16 %v70
    %v99 = vunpack.c.l.b16 %v71
    %v100 = vpack.c.b16 %v97, %v96
    %v101 = vpack.c.b16 %v99, %v98
    %v120 = vunpack.c.l.b16 %v72
    %v121 = vunpack.c.l.b16 %v73
    %v122 = vunpack.c.l.b16 %v74
    %v123 = vunpack.c.l.b16 %v75
    %v124 = vunpack.c.l.b16 %v76
    %v125 = vunpack.c.l.b16 %v77
    %v126 = vunpack.c.l.b16 %v78
    %v127 = vunpack.c.l.b16 %v79
    %v128 = vunpack.c.l.b16 %v80
    %v129 = vunpack.c.l.b16 %v81
    %v130 = vunpack.c.l.b16 %v82
    %v131 = vunpack.c.l.b16 %v83
    %v132 = vunpack.c.l.b16 %v84
    %v133 = vunpack.c.l.b16 %v85
    %v134 = vunpack.c.l.b16 %v86
    %v135 = vunpack.c.l.b16 %v87
    %v136 = vpack.c.b16 %v121, %v120
    %v137 = vpack.c.b16 %v123, %v122
    %v138 = vpack.c.b16 %v125, %v124
    %v139 = vpack.c.b16 %v127, %v126
    %v140 = vpack.c.b16 %v129, %v128
    %v141 = vpack.c.b16 %v131, %v130
    %v142 = vpack.c.b16 %v133, %v132
    %v143 = vpack.c.b16 %v135, %v134
    %152 = vmatpush.bf16.msra.mxu0 %v143
    %153 = vmatpush.bf16.msra.mxu0 %v142
    %154 = vmatpush.bf16.msra.mxu0 %v141
    %155 = vmatpush.bf16.msra.mxu0 %v140
    %156 = vmatpush.bf16.msra.mxu0 %v139
    %157 = vmatpush.bf16.msra.mxu0 %v138
    %158 = vmatpush.bf16.msra.mxu0 %v137
    %159 = vmatpush.bf16.msra.mxu0 %v136
    %160 = vmatmul.bf16.gmra.mxu0 %v100
    %v161 = vpop.f32.mrf.mxu0
    %v162 = vadd.f32 %v90, %v161
    %v163 = vpop.f32.mrf.mxu0
    %v164 = vadd.f32 %v90, %v163
    %165 = vmatmul.bf16.gmra.mxu0 %v101
    %v166 = vpop.f32.mrf.mxu0
    %v167 = vadd.f32 %v90, %v166
    %v168 = vpop.f32.mrf.mxu0
    %v169 = vadd.f32 %v90, %v168
    %170 = vdwg.mxu0
    %v171 = vmax.f32 %v162, 0.0
    %v172 = vmax.f32 %v164, 0.0
    %v173 = vmax.f32 %v167, 0.0
    %v174 = vmax.f32 %v169, 0.0
    %v175 = vpack.c.bf16 %v172, %v171
    %v176 = vpack.c.bf16 %v174, %v173
    %v177 = vld [vmem:[#allocation7] sm:$0xf]
    %v178 = vld [vmem:[#allocation7 + $0x4] sm:$0xf]
    %v179 = vld [vmem:[#allocation7 + $0x8] sm:$0xf]
    %v180 = vld [vmem:[#allocation7 + $0xc] sm:$0xf]
    %v181 = vld [vmem:[#allocation7 + $0x10] sm:$0xf]
    %v182 = vld [vmem:[#allocation7 + $0x14] sm:$0xf]
    %v183 = vld [vmem:[#allocation7 + $0x18] sm:$0xf]
    %v184 = vld [vmem:[#allocation7 + $0x1c] sm:$0xf]
    %v185 = vld [vmem:[#allocation7 + $0x20] sm:$0xf]
    %v186 = vld [vmem:[#allocation7 + $0x24] sm:$0xf]
    %v187 = vld [vmem:[#allocation7 + $0x28] sm:$0xf]
    %v188 = vld [vmem:[#allocation7 + $0x2c] sm:$0xf]
    %v189 = vld [vmem:[#allocation7 + $0x30] sm:$0xf]
    %v190 = vld [vmem:[#allocation7 + $0x34] sm:$0xf]
    %v191 = vld [vmem:[#allocation7 + $0x38] sm:$0xf]
    %v192 = vld [vmem:[#allocation7 + $0x3c] sm:$0xf]
    %v193 = vld [vmem:[%s4] sm:$0x1]
    %v195 = vperm.slane %v193, 0
    %v213 = vunpack.c.l.b16 %v177
    %v214 = vunpack.c.l.b16 %v178
    %v215 = vunpack.c.l.b16 %v179
    %v216 = vunpack.c.l.b16 %v180
    %v217 = vunpack.c.l.b16 %v181
    %v218 = vunpack.c.l.b16 %v182
    %v219 = vunpack.c.l.b16 %v183
    %v220 = vunpack.c.l.b16 %v184
    %v221 = vunpack.c.l.b16 %v185
    %v222 = vunpack.c.l.b16 %v186
    %v223 = vunpack.c.l.b16 %v187
    %v224 = vunpack.c.l.b16 %v188
    %v225 = vunpack.c.l.b16 %v189
    %v226 = vunpack.c.l.b16 %v190
    %v227 = vunpack.c.l.b16 %v191
    %v228 = vunpack.c.l.b16 %v192
    %v229 = vpack.c.b16 %v214, %v213
    %v230 = vpack.c.b16 %v216, %v215
    %v231 = vpack.c.b16 %v218, %v217
    %v232 = vpack.c.b16 %v220, %v219
    %v233 = vpack.c.b16 %v222, %v221
    %v234 = vpack.c.b16 %v224, %v223
    %v235 = vpack.c.b16 %v226, %v225
    %v236 = vpack.c.b16 %v228, %v227
    %245 = vmatpush.bf16.msra.mxu0 %v236
    %246 = vmatpush.bf16.msra.mxu0 %v235
    %247 = vmatpush.bf16.msra.mxu0 %v234
    %248 = vmatpush.bf16.msra.mxu0 %v233
    %249 = vmatpush.bf16.msra.mxu0 %v232
    %250 = vmatpush.bf16.msra.mxu0 %v231
    %251 = vmatpush.bf16.msra.mxu0 %v230
    %252 = vmatpush.bf16.msra.mxu0 %v229
    %253 = vmatmul.bf16.gmra.mxu0 %v175
    %v254 = vpop.f32.mrf.mxu0
    %v255 = vadd.f32 %v195, %v254
    %v256 = vpop.f32.mrf.mxu0
    %v257 = vadd.f32 %v195, %v256
    %258 = vmatmul.bf16.gmra.mxu0 %v176
    %v259 = vpop.f32.mrf.mxu0
    %v260 = vadd.f32 %v195, %v259
    %v261 = vpop.f32.mrf.mxu0
    %v262 = vadd.f32 %v195, %v261
    %263 = vdwg.mxu0
    %v264 = vmul.f32 %v255, %v255
    %v265 = vmul.f32 %v257, %v257
    %v266 = vmul.f32 %v260, %v260
    %v267 = vmul.f32 %v262, %v262
    %268 = vadd.xlane.f32.xlu0 %v264
    %v269 = vpop.xlane.xlu0 %268
    %270 = vadd.xlane.f32.xlu0 %v265
    %v271 = vpop.xlane.xlu0 %270
    %272 = vadd.xlane.f32.xlu0 %v266
    %v273 = vpop.xlane.xlu0 %272
    %274 = vadd.xlane.f32.xlu0 %v267
    %v275 = vpop.xlane.xlu0 %274
    %v276 = vmax.f32 %v269, 1e-24
    %v277 = vmax.f32 %v271, 1e-24
    %v278 = vmax.f32 %v273, 1e-24
    %v279 = vmax.f32 %v275, 1e-24
    %v280 = vrsqrt.pop %v276
    %v281 = vmul.f32 %v280, %v276
    %v282 = vmul.f32 %v281, %v280
    %v283 = vmul.f32 0.5, %v282
    %v284 = vsub.f32 1.5, %v283
    %v285 = vmul.f32 %v280, %v284
    %vm286 = vweird.f32 %v276
    %vm287 = vweird.f32 %v280
    %vm288 = vmor %vm286, %vm287
    %v289 = vsel %vm288, %v280, %v285
    %v290 = vrsqrt.pop %v277
    %v291 = vmul.f32 %v290, %v277
    %v292 = vmul.f32 %v291, %v290
    %v293 = vmul.f32 0.5, %v292
    %v294 = vsub.f32 1.5, %v293
    %v295 = vmul.f32 %v290, %v294
    %vm296 = vweird.f32 %v277
    %vm297 = vweird.f32 %v290
    %vm298 = vmor %vm296, %vm297
    %v299 = vsel %vm298, %v290, %v295
    %v300 = vrsqrt.pop %v278
    %v301 = vmul.f32 %v300, %v278
    %v302 = vmul.f32 %v301, %v300
    %v303 = vmul.f32 0.5, %v302
    %v304 = vsub.f32 1.5, %v303
    %v305 = vmul.f32 %v300, %v304
    %vm306 = vweird.f32 %v278
    %vm307 = vweird.f32 %v300
    %vm308 = vmor %vm306, %vm307
    %v309 = vsel %vm308, %v300, %v305
    %v310 = vrsqrt.pop %v279
    %v311 = vmul.f32 %v310, %v279
    %v312 = vmul.f32 %v311, %v310
    %v313 = vmul.f32 0.5, %v312
    %v314 = vsub.f32 1.5, %v313
    %v315 = vmul.f32 %v310, %v314
    %vm316 = vweird.f32 %v279
    %vm317 = vweird.f32 %v310
    %vm318 = vmor %vm316, %vm317
    %v319 = vsel %vm318, %v310, %v315
    %v320 = vmul.f32 %v255, %v289
    %v321 = vmul.f32 %v257, %v299
    %v322 = vmul.f32 %v260, %v309
    %v323 = vmul.f32 %v262, %v319
    %v324 = vpack.c.bf16 %v320, %v320
    %v325 = vpack.c.bf16 %v321, %v321
    %v326 = vpack.c.bf16 %v322, %v322
    %v327 = vpack.c.bf16 %v323, %v323
    %328 = vst [vmem:[#allocation8] sm:$0xf] %v324
    %329 = vst [vmem:[#allocation8 + $0x4] sm:$0xf] %v325
    %330 = vst [vmem:[#allocation8 + $0x8] sm:$0xf] %v326
    %331 = vst [vmem:[#allocation8 + $0xc] sm:$0xf] %v327
    // Predicated region
    $region34: #{tpu_custom_call.1} parent=1 // pred_check
      _
    $region35: #{tpu_custom_call.1} parent=1 // pred_check_branch
      %333 = sbr.rel (0) target = $region37
    $region36: #{tpu_custom_call.1} parent=1 // pred_region
      %335 = vsyncadd [#allocation4], 0
      %s336 = sshll.u32 [#allocation8], 4
      %s337 = int_to_ptr.vmem [resolvable:$true] %s336
      %s338 = sshll.u32 %s5, 4
      %s339 = int_to_ptr.hbm [resolvable:$true] %s338
      %344 = dma.vmem_to_hbm [thread:$0]  %s337, 256, %s339, [#allocation4], 64, 64, 4
    $region37: #{tpu_custom_call.1} parent=1 // pred_fallthru
      _
    // Predicated region
    $region38: #{tpu_custom_call.1} parent=1 // pred_check
      _
    $region39: #{tpu_custom_call.1} parent=1 // pred_check_branch
      %346 = sbr.rel (0) target = $region41
    $region40: #{tpu_custom_call.1} parent=1 // pred_region
      %348 = dma.done [#allocation4], 256
    $region41: #{tpu_custom_call.1} parent=1 // pred_fallthru
      _
    %349 = vsyncpa [#allocation3], 1
    %350 = vsyncpa [#allocation6], 1
    %351 = vsyncpa [#allocation4], 1

// kernel: tpu_custom_call.1
$region0: #{tpu_custom_call.1}
  #allocation0 [shape = 'u32[]', space=smem, size = 0x4, offset = 0x4, fixed_abs, tag = 'smem constant byte address 0x4 - core index']
  #allocation1 [shape = 'u32[72,128]{1,0:T(1,128)}', space=vmem, size = 0x9000, scoped, tag = 'internal scratch']
  %s0 = inlined_call_operand.hbm [shape: bf16[32,128], index: 0, kind: input, shape index: {}]
  %s1 = inlined_call_operand.hbm [shape: bf16[128,128], index: 1, kind: input, shape index: {}]
  %s2 = inlined_call_operand.vmem [shape: f32[1,128], index: 2, kind: input, shape index: {}]
  %s3 = inlined_call_operand.hbm [shape: bf16[128,128], index: 3, kind: input, shape index: {}]
  %s4 = inlined_call_operand.vmem [shape: f32[1,128], index: 4, kind: input, shape index: {}]
  %s5 = inlined_call_operand.hbm [shape: bf16[32,128], index: 5, kind: output, shape index: {}]
  %s6 = sld [smem:[#allocation0]]
  $region42: #{tpu_custom_call.1} parent=0
    _
  %s8 = ssub.s32 1, %s6
  %s9 = scalar_select 0, %s8, %s6
  $region1: #{tpu_custom_call.1} parent=0
    #allocation2 [shape = 'u8[8192]{0}', space=vmem, size = 0x2000, scoped, tag = 'input window, operand 0, single buffered']
    #allocation3 [shape = 's32[1]{0}', space=sflag, size = 0x4, scoped, tag = 'scoped memory for tpu_custom_call.1']
    #allocation4 [shape = 's32[1]{0}', space=sflag, size = 0x4, scoped, tag = 'scoped memory for tpu_custom_call.1']
    #allocation5 [shape = 'u8[32768]{0}', space=vmem, size = 0x8000, scoped, tag = 'input window, operand 1, single buffered']
    #allocation6 [shape = 's32[1]{0}', space=sflag, size = 0x4, scoped, tag = 'scoped memory for tpu_custom_call.1']
    #allocation7 [shape = 'u8[32768]{0}', space=vmem, size = 0x8000, scoped, tag = 'input window, operand 3, single buffered']
    #allocation8 [shape = 'u8[8192]{0}', space=vmem, size = 0x2000, scoped, tag = 'output window, operand 0, single buffered']
    %10 = vsyncpa [#allocation3], 0
    %11 = vsyncpa [#allocation6], 0
    %12 = vsyncpa [#allocation4], 0
    // Predicated region
    $region2: #{tpu_custom_call.1} parent=1 // pred_check
      _
    $region3: #{tpu_custom_call.1} parent=1 // pred_check_branch
      %14 = sbr.rel (0) target = $region5
    $region4: #{tpu_custom_call.1} parent=1 // pred_region
      %16 = vsyncadd [#allocation3], 0
      %s17 = sshll.u32 %s0, 4
      %s18 = int_to_ptr.hbm [resolvable:$true] %s17
      %s19 = sshll.u32 [#allocation2], 4
      %s20 = int_to_ptr.vmem [resolvable:$true] %s19
      %25 = dma.hbm_to_vmem [thread:$0]  %s18, 256, %s20, [#allocation3], 64, 64, 4
    $region5: #{tpu_custom_call.1} parent=1 // pred_fallthru
      _
    // Predicated region
    $region6: #{tpu_custom_call.1} parent=1 // pred_check
      _
    $region7: #{tpu_custom_call.1} parent=1 // pred_check_branch
      %27 = sbr.rel (0) target = $region9
    $region8: #{tpu_custom_call.1} parent=1 // pred_region
      %29 = vsyncadd [#allocation6], 0
      %s30 = sshll.u32 %s1, 4
      %s31 = int_to_ptr.hbm [resolvable:$true] %s30
      %s32 = sshll.u32 [#allocation5], 4
      %s33 = int_to_ptr.vmem [resolvable:$true] %s32
      %38 = dma.hbm_to_vmem [thread:$0]  %s31, 1024, %s33, [#allocation6], 64, 64, 4
    $region9: #{tpu_custom_call.1} parent=1 // pred_fallthru
      _
    // Predicated region
    $region10: #{tpu_custom_call.1} parent=1 // pred_check
      _
    $region11: #{tpu_custom_call.1} parent=1 // pred_check_branch
      %40 = sbr.rel (0) target = $region13
    $region12: #{tpu_custom_call.1} parent=1 // pred_region
      _
    $region13: #{tpu_custom_call.1} parent=1 // pred_fallthru
      _
    // Predicated region
    $region14: #{tpu_custom_call.1} parent=1 // pred_check
      _
    $region15: #{tpu_custom_call.1} parent=1 // pred_check_branch
      %42 = sbr.rel (0) target = $region17
    $region16: #{tpu_custom_call.1} parent=1 // pred_region
      %44 = vsyncadd [#allocation6], 0
      %s45 = sshll.u32 %s3, 4
      %s46 = int_to_ptr.hbm [resolvable:$true] %s45
      %s47 = sshll.u32 [#allocation7], 4
      %s48 = int_to_ptr.vmem [resolvable:$true] %s47
      %53 = dma.hbm_to_vmem [thread:$0]  %s46, 1024, %s48, [#allocation6], 64, 64, 4
    $region17: #{tpu_custom_call.1} parent=1 // pred_fallthru
      _
    // Predicated region
    $region18: #{tpu_custom_call.1} parent=1 // pred_check
      _
    $region19: #{tpu_custom_call.1} parent=1 // pred_check_branch
      %55 = sbr.rel (0) target = $region21
    $region20: #{tpu_custom_call.1} parent=1 // pred_region
      _
    $region21: #{tpu_custom_call.1} parent=1 // pred_fallthru
      _
    // Predicated region
    $region22: #{tpu_custom_call.1} parent=1 // pred_check
      _
    $region23: #{tpu_custom_call.1} parent=1 // pred_check_branch
      %57 = sbr.rel (0) target = $region25
    $region24: #{tpu_custom_call.1} parent=1 // pred_region
      %59 = dma.done [#allocation3], 256
    $region25: #{tpu_custom_call.1} parent=1 // pred_fallthru
      _
    // Predicated region
    $region26: #{tpu_custom_call.1} parent=1 // pred_check
      _
    $region27: #{tpu_custom_call.1} parent=1 // pred_check_branch
      %61 = sbr.rel (0) target = $region29
    $region28: #{tpu_custom_call.1} parent=1 // pred_region
      %63 = dma.done [#allocation6], 1024
    $region29: #{tpu_custom_call.1} parent=1 // pred_fallthru
      _
    // Predicated region
    $region30: #{tpu_custom_call.1} parent=1 // pred_check
      _
    $region31: #{tpu_custom_call.1} parent=1 // pred_check_branch
      %65 = sbr.rel (0) target = $region33
    $region32: #{tpu_custom_call.1} parent=1 // pred_region
      %67 = dma.done [#allocation6], 1024
    $region33: #{tpu_custom_call.1} parent=1 // pred_fallthru
      _
    %v68 = vld [vmem:[#allocation2] sm:$0xf]
    %v69 = vld [vmem:[#allocation2 + $0x4] sm:$0xf]
    %v70 = vld [vmem:[#allocation2 + $0x8] sm:$0xf]
    %v71 = vld [vmem:[#allocation2 + $0xc] sm:$0xf]
    %v72 = vld [vmem:[#allocation5] sm:$0xf]
    %v73 = vld [vmem:[#allocation5 + $0x4] sm:$0xf]
    %v74 = vld [vmem:[#allocation5 + $0x8] sm:$0xf]
    %v75 = vld [vmem:[#allocation5 + $0xc] sm:$0xf]
    %v76 = vld [vmem:[#allocation5 + $0x10] sm:$0xf]
    %v77 = vld [vmem:[#allocation5 + $0x14] sm:$0xf]
    %v78 = vld [vmem:[#allocation5 + $0x18] sm:$0xf]
    %v79 = vld [vmem:[#allocation5 + $0x1c] sm:$0xf]
    %v80 = vld [vmem:[#allocation5 + $0x20] sm:$0xf]
    %v81 = vld [vmem:[#allocation5 + $0x24] sm:$0xf]
    %v82 = vld [vmem:[#allocation5 + $0x28] sm:$0xf]
    %v83 = vld [vmem:[#allocation5 + $0x2c] sm:$0xf]
    %v84 = vld [vmem:[#allocation5 + $0x30] sm:$0xf]
    %v85 = vld [vmem:[#allocation5 + $0x34] sm:$0xf]
    %v86 = vld [vmem:[#allocation5 + $0x38] sm:$0xf]
    %v87 = vld [vmem:[#allocation5 + $0x3c] sm:$0xf]
    %v88 = vld [vmem:[%s2] sm:$0x1]
    %v90 = vperm.slane %v88, 0
    %v96 = vunpack.c.l.b16 %v68
    %v97 = vunpack.c.l.b16 %v69
    %v98 = vunpack.c.l.b16 %v70
    %v99 = vunpack.c.l.b16 %v71
    %v100 = vpack.c.b16 %v97, %v96
    %v101 = vpack.c.b16 %v99, %v98
    %v120 = vunpack.c.l.b16 %v72
    %v121 = vunpack.c.l.b16 %v73
    %v122 = vunpack.c.l.b16 %v74
    %v123 = vunpack.c.l.b16 %v75
    %v124 = vunpack.c.l.b16 %v76
    %v125 = vunpack.c.l.b16 %v77
    %v126 = vunpack.c.l.b16 %v78
    %v127 = vunpack.c.l.b16 %v79
    %v128 = vunpack.c.l.b16 %v80
    %v129 = vunpack.c.l.b16 %v81
    %v130 = vunpack.c.l.b16 %v82
    %v131 = vunpack.c.l.b16 %v83
    %v132 = vunpack.c.l.b16 %v84
    %v133 = vunpack.c.l.b16 %v85
    %v134 = vunpack.c.l.b16 %v86
    %v135 = vunpack.c.l.b16 %v87
    %v136 = vpack.c.b16 %v121, %v120
    %v137 = vpack.c.b16 %v123, %v122
    %v138 = vpack.c.b16 %v125, %v124
    %v139 = vpack.c.b16 %v127, %v126
    %v140 = vpack.c.b16 %v129, %v128
    %v141 = vpack.c.b16 %v131, %v130
    %v142 = vpack.c.b16 %v133, %v132
    %v143 = vpack.c.b16 %v135, %v134
    %152 = vmatpush.bf16.msra.mxu0 %v143
    %153 = vmatpush.bf16.msra.mxu0 %v142
    %154 = vmatpush.bf16.msra.mxu0 %v141
    %155 = vmatpush.bf16.msra.mxu0 %v140
    %156 = vmatpush.bf16.msra.mxu0 %v139
    %157 = vmatpush.bf16.msra.mxu0 %v138
    %158 = vmatpush.bf16.msra.mxu0 %v137
    %159 = vmatpush.bf16.msra.mxu0 %v136
    %160 = vmatmul.bf16.gmra.mxu0 %v100
    %v161 = vpop.f32.mrf.mxu0
    %v162 = vadd.f32 %v90, %v161
    %v163 = vpop.f32.mrf.mxu0
    %v164 = vadd.f32 %v90, %v163
    %165 = vmatmul.bf16.gmra.mxu0 %v101
    %v166 = vpop.f32.mrf.mxu0
    %v167 = vadd.f32 %v90, %v166
    %v168 = vpop.f32.mrf.mxu0
    %v169 = vadd.f32 %v90, %v168
    %170 = vdwg.mxu0
    %v171 = vmax.f32 %v162, 0.0
    %v172 = vmax.f32 %v164, 0.0
    %v173 = vmax.f32 %v167, 0.0
    %v174 = vmax.f32 %v169, 0.0
    %v175 = vpack.c.bf16 %v172, %v171
    %v176 = vpack.c.bf16 %v174, %v173
    %v177 = vld [vmem:[#allocation7] sm:$0xf]
    %v178 = vld [vmem:[#allocation7 + $0x4] sm:$0xf]
    %v179 = vld [vmem:[#allocation7 + $0x8] sm:$0xf]
    %v180 = vld [vmem:[#allocation7 + $0xc] sm:$0xf]
    %v181 = vld [vmem:[#allocation7 + $0x10] sm:$0xf]
    %v182 = vld [vmem:[#allocation7 + $0x14] sm:$0xf]
    %v183 = vld [vmem:[#allocation7 + $0x18] sm:$0xf]
    %v184 = vld [vmem:[#allocation7 + $0x1c] sm:$0xf]
    %v185 = vld [vmem:[#allocation7 + $0x20] sm:$0xf]
    %v186 = vld [vmem:[#allocation7 + $0x24] sm:$0xf]
    %v187 = vld [vmem:[#allocation7 + $0x28] sm:$0xf]
    %v188 = vld [vmem:[#allocation7 + $0x2c] sm:$0xf]
    %v189 = vld [vmem:[#allocation7 + $0x30] sm:$0xf]
    %v190 = vld [vmem:[#allocation7 + $0x34] sm:$0xf]
    %v191 = vld [vmem:[#allocation7 + $0x38] sm:$0xf]
    %v192 = vld [vmem:[#allocation7 + $0x3c] sm:$0xf]
    %v193 = vld [vmem:[%s4] sm:$0x1]
    %v195 = vperm.slane %v193, 0
    %v213 = vunpack.c.l.b16 %v177
    %v214 = vunpack.c.l.b16 %v178
    %v215 = vunpack.c.l.b16 %v179
    %v216 = vunpack.c.l.b16 %v180
    %v217 = vunpack.c.l.b16 %v181
    %v218 = vunpack.c.l.b16 %v182
    %v219 = vunpack.c.l.b16 %v183
    %v220 = vunpack.c.l.b16 %v184
    %v221 = vunpack.c.l.b16 %v185
    %v222 = vunpack.c.l.b16 %v186
    %v223 = vunpack.c.l.b16 %v187
    %v224 = vunpack.c.l.b16 %v188
    %v225 = vunpack.c.l.b16 %v189
    %v226 = vunpack.c.l.b16 %v190
    %v227 = vunpack.c.l.b16 %v191
    %v228 = vunpack.c.l.b16 %v192
    %v229 = vpack.c.b16 %v214, %v213
    %v230 = vpack.c.b16 %v216, %v215
    %v231 = vpack.c.b16 %v218, %v217
    %v232 = vpack.c.b16 %v220, %v219
    %v233 = vpack.c.b16 %v222, %v221
    %v234 = vpack.c.b16 %v224, %v223
    %v235 = vpack.c.b16 %v226, %v225
    %v236 = vpack.c.b16 %v228, %v227
    %245 = vmatpush.bf16.msra.mxu0 %v236
    %246 = vmatpush.bf16.msra.mxu0 %v235
    %247 = vmatpush.bf16.msra.mxu0 %v234
    %248 = vmatpush.bf16.msra.mxu0 %v233
    %249 = vmatpush.bf16.msra.mxu0 %v232
    %250 = vmatpush.bf16.msra.mxu0 %v231
    %251 = vmatpush.bf16.msra.mxu0 %v230
    %252 = vmatpush.bf16.msra.mxu0 %v229
    %253 = vmatmul.bf16.gmra.mxu0 %v175
    %v254 = vpop.f32.mrf.mxu0
    %v255 = vadd.f32 %v195, %v254
    %v256 = vpop.f32.mrf.mxu0
    %v257 = vadd.f32 %v195, %v256
    %258 = vmatmul.bf16.gmra.mxu0 %v176
    %v259 = vpop.f32.mrf.mxu0
    %v260 = vadd.f32 %v195, %v259
    %v261 = vpop.f32.mrf.mxu0
    %v262 = vadd.f32 %v195, %v261
    %263 = vdwg.mxu0
    %v264 = vmul.f32 %v255, %v255
    %v265 = vmul.f32 %v257, %v257
    %v266 = vmul.f32 %v260, %v260
    %v267 = vmul.f32 %v262, %v262
    %268 = vadd.xlane.f32.xlu0 %v264
    %v269 = vpop.xlane.xlu0 %268
    %270 = vadd.xlane.f32.xlu0 %v265
    %v271 = vpop.xlane.xlu0 %270
    %272 = vadd.xlane.f32.xlu0 %v266
    %v273 = vpop.xlane.xlu0 %272
    %274 = vadd.xlane.f32.xlu0 %v267
    %v275 = vpop.xlane.xlu0 %274
    %v276 = vmax.f32 %v269, 1e-24
    %v277 = vmax.f32 %v271, 1e-24
    %v278 = vmax.f32 %v273, 1e-24
    %v279 = vmax.f32 %v275, 1e-24
    %v280 = vrsqrt.pop %v276
    %v281 = vmul.f32 %v280, %v276
    %v282 = vmul.f32 %v281, %v280
    %v283 = vmul.f32 0.5, %v282
    %v284 = vsub.f32 1.5, %v283
    %v285 = vmul.f32 %v280, %v284
    %vm286 = vweird.f32 %v276
    %vm287 = vweird.f32 %v280
    %vm288 = vmor %vm286, %vm287
    %v289 = vsel %vm288, %v280, %v285
    %v290 = vrsqrt.pop %v277
    %v291 = vmul.f32 %v290, %v277
    %v292 = vmul.f32 %v291, %v290
    %v293 = vmul.f32 0.5, %v292
    %v294 = vsub.f32 1.5, %v293
    %v295 = vmul.f32 %v290, %v294
    %vm296 = vweird.f32 %v277
    %vm297 = vweird.f32 %v290
    %vm298 = vmor %vm296, %vm297
    %v299 = vsel %vm298, %v290, %v295
    %v300 = vrsqrt.pop %v278
    %v301 = vmul.f32 %v300, %v278
    %v302 = vmul.f32 %v301, %v300
    %v303 = vmul.f32 0.5, %v302
    %v304 = vsub.f32 1.5, %v303
    %v305 = vmul.f32 %v300, %v304
    %vm306 = vweird.f32 %v278
    %vm307 = vweird.f32 %v300
    %vm308 = vmor %vm306, %vm307
    %v309 = vsel %vm308, %v300, %v305
    %v310 = vrsqrt.pop %v279
    %v311 = vmul.f32 %v310, %v279
    %v312 = vmul.f32 %v311, %v310
    %v313 = vmul.f32 0.5, %v312
    %v314 = vsub.f32 1.5, %v313
    %v315 = vmul.f32 %v310, %v314
    %vm316 = vweird.f32 %v279
    %vm317 = vweird.f32 %v310
    %vm318 = vmor %vm316, %vm317
    %v319 = vsel %vm318, %v310, %v315
    %v320 = vmul.f32 %v255, %v289
    %v321 = vmul.f32 %v257, %v299
    %v322 = vmul.f32 %v260, %v309
    %v323 = vmul.f32 %v262, %v319
    %v324 = vpack.c.bf16 %v320, %v320
    %v325 = vpack.c.bf16 %v321, %v321
    %v326 = vpack.c.bf16 %v322, %v322
    %v327 = vpack.c.bf16 %v323, %v323
    %328 = vst [vmem:[#allocation8] sm:$0xf] %v324
    %329 = vst [vmem:[#allocation8 + $0x4] sm:$0xf] %v325
    %330 = vst [vmem:[#allocation8 + $0x8] sm:$0xf] %v326
    %331 = vst [vmem:[#allocation8 + $0xc] sm:$0xf] %v327
    // Predicated region
    $region34: #{tpu_custom_call.1} parent=1 // pred_check
      _
    $region35: #{tpu_custom_call.1} parent=1 // pred_check_branch
      %333 = sbr.rel (0) target = $region37
    $region36: #{tpu_custom_call.1} parent=1 // pred_region
      %335 = vsyncadd [#allocation4], 0
      %s336 = sshll.u32 [#allocation8], 4
      %s337 = int_to_ptr.vmem [resolvable:$true] %s336
      %s338 = sshll.u32 %s5, 4
      %s339 = int_to_ptr.hbm [resolvable:$true] %s338
      %344 = dma.vmem_to_hbm [thread:$0]  %s337, 256, %s339, [#allocation4], 64, 64, 4
    $region37: #{tpu_custom_call.1} parent=1 // pred_fallthru
      _
    // Predicated region
    $region38: #{tpu_custom_call.1} parent=1 // pred_check
      _
    $region39: #{tpu_custom_call.1} parent=1 // pred_check_branch
      %346 = sbr.rel (0) target = $region41
    $region40: #{tpu_custom_call.1} parent=1 // pred_region
      %348 = dma.done [#allocation4], 256
    $region41: #{tpu_custom_call.1} parent=1 // pred_fallthru
      _
    %349 = vsyncpa [#allocation3], 1
    %350 = vsyncpa [#allocation6], 1
    %351 = vsyncpa [#allocation4], 1

</llo_original>
